<compile_context>
chip_gen: v5e
topology: v5e:2x2
jax: 0.10.0
libtpu: 0.0.40
codegen_flags: <defaults>
</compile_context>

<pallas_src>
import jax
import jax.numpy as jnp
from jax.experimental import pallas as pl
from jax.experimental.pallas import tpu as pltpu


def _round_up(x, m):
    return ((x + m - 1) // m) * m


def _mlp_kernel(x_ref, w1_ref, b1_ref, w2_ref, b2_ref, o_ref):
    x = x_ref[...]                       # (tm, n_feature)   f32
    w1 = w1_ref[...]                     # (n_feature, n_hidden)
    n_feature = x.shape[1]

    # ---- Layer 1 ----
    if n_feature <= 8:
        # Tiny contraction: VPU broadcast-FMA, MXU stays free.
        h = x[:, 0:1] * w1[0:1, :]
        for k in range(1, n_feature):    # static, unrolled at trace time
            h = h + x[:, k:k + 1] * w1[k:k + 1, :]
    else:
        # Larger n_feature: use the MXU instead of n_feature lane-splats.
        h = jnp.dot(x, w1, preferred_element_type=jnp.float32)
    h = jnp.maximum(h + b1_ref[...], 0.0)          # bias + ReLU, once per tile

    # ---- Layer 2: MXU matmul, narrow (tm, n_output) store ----
    y = jnp.dot(h, w2_ref[...], preferred_element_type=jnp.float32)
    o_ref[...] = (y + b2_ref[...]).astype(o_ref.dtype)


def net_forward(x, w1, b1, w2, b2, *, block_rows=4096):
    """Pallas implementation of Net.forward.

    x : (N, n_feature) f32
    w1: (n_feature, n_hidden), b1: (1, n_hidden)
    w2: (n_hidden, n_output),  b2: (1, n_output)
    returns (N, n_output) f32
    """
    n, n_feature = x.shape
    n_hidden = w1.shape[1]
    n_out = w2.shape[1]

    # Batch tiling: tm rows per grid step (multiple of 8).
    n8 = _round_up(n, 8)
    tm = min(block_rows, n8)
    # v7x has 2 TensorCores: if a single tile would cover a large batch, split it
    # so both cores get work.  Skip for small N (per-step overhead ~0.35us).
    if tm == n8 and n8 >= 2048:
        tm = _round_up((n8 + 1) // 2, 8)
    n_pad = _round_up(n, tm)
    if n_pad != n:
        x = jnp.pad(x, ((0, n_pad - n), (0, 0)))
    grid = (n_pad // tm,)

    cost = pl.CostEstimate(
        flops=2 * n_pad * (n_feature * n_hidden + n_hidden * n_out),
        transcendentals=0,
        bytes_accessed=4 * (n_pad * n_feature + n_feature * n_hidden + n_hidden
                            + n_hidden * n_out + n_out + n_pad * n_out),
    )

    out = pl.pallas_call(
        _mlp_kernel,
        out_shape=jax.ShapeDtypeStruct((n_pad, n_out), jnp.float32),
        grid=grid,
        in_specs=[
            pl.BlockSpec((tm, n_feature), lambda i: (i, 0)),          # x: batch-tiled
            pl.BlockSpec((n_feature, n_hidden), lambda i: (0, 0)),    # w1: resident
            pl.BlockSpec((1, n_hidden), lambda i: (0, 0)),            # b1: resident
            pl.BlockSpec((n_hidden, n_out), lambda i: (0, 0)),        # w2: resident
            pl.BlockSpec((1, n_out), lambda i: (0, 0)),               # b2: resident
        ],
        out_specs=pl.BlockSpec((tm, n_out), lambda i: (i, 0)),        # narrow output
        compiler_params=pltpu.CompilerParams(
            dimension_semantics=("parallel",),   # shard batch tiles across v7x's 2 TCs
        ),
        cost_estimate=cost,
    )(x, w1, b1, w2, b2)

    return out[:n]


def init_linear_params(key, fan_in, fan_out):
    """Deterministic init mimicking torch.nn.Linear default (uniform +-1/sqrt(fan_in))."""
    kw, kb = jax.random.split(key)
    bound = 1.0 / jnp.sqrt(jnp.float32(fan_in))
    w = jax.random.uniform(kw, (fan_in, fan_out), jnp.float32, -bound, bound)
    b = jax.random.uniform(kb, (1, fan_out), jnp.float32, -bound, bound)
    return w, b


if __name__ == "__main__":
    # Net(n_feature=2, n_hidden=32, n_output=2); two Gaussian clusters at +2 / -2
    # (mirrors the data construction in the original script: 100 points per cluster).
    n_feature, n_hidden, n_output = 2, 32, 2
    half = 100

    key = jax.random.PRNGKey(0)
    k_x0, k_x1, k_h, k_p = jax.random.split(key, 4)

    base = jnp.ones((half, n_feature), jnp.float32)
    x0 = 2.0 * base + jax.random.normal(k_x0, (half, n_feature), jnp.float32)
    x1 = -2.0 * base + jax.random.normal(k_x1, (half, n_feature), jnp.float32)
    x = jnp.concatenate([x0, x1], axis=0)  # (200, 2) float32

    w1, b1 = init_linear_params(k_h, n_feature, n_hidden)   # hidden layer
    w2, b2 = init_linear_params(k_p, n_hidden, n_output)    # predict layer

    out = net_forward(x, w1, b1, w2, b2)
    out = jax.block_until_ready(out)

    # Sanity check against plain JAX reference.
    ref = jnp.maximum(x @ w1 + b1, 0.0) @ w2 + b2
    assert out.shape == (2 * half, n_output)
    assert jnp.allclose(out, ref, atol=1e-5, rtol=1e-5)

    print("KERNEL_OK")
</pallas_src>

<mosaic_0001>
module attributes {stable_mosaic.version = 11 : i64} {
  func.func @_mlp_kernel(%arg0: i32, %arg1: memref<200x2xf32, #tpu.memory_space<vmem>>, %arg2: memref<2x32xf32, #tpu.memory_space<vmem>>, %arg3: memref<1x32xf32, #tpu.memory_space<vmem>>, %arg4: memref<32x2xf32, #tpu.memory_space<vmem>>, %arg5: memref<1x2xf32, #tpu.memory_space<vmem>>, %arg6: memref<200x2xf32, #tpu.memory_space<vmem>>) attributes {dimension_semantics = [#tpu.dimension_semantics<parallel>], iteration_bounds = array<i64: 1>, scalar_prefetch = 0 : i64, scratch_operands = 0 : i64, tpu.core_type = #tpu.core_type<tc>, window_params = [{transform_indices = @transform_0, window_bounds = array<i64: 200, 2>}, {pipeline_mode = #tpu.pipeline_mode<synchronous>, transform_indices = @transform_1, window_bounds = array<i64: 2, 32>}, {pipeline_mode = #tpu.pipeline_mode<synchronous>, transform_indices = @transform_2, window_bounds = array<i64: 1, 32>}, {pipeline_mode = #tpu.pipeline_mode<synchronous>, transform_indices = @transform_3, window_bounds = array<i64: 32, 2>}, {pipeline_mode = #tpu.pipeline_mode<synchronous>, transform_indices = @transform_4, window_bounds = array<i64: 1, 2>}, {transform_indices = @transform_5, window_bounds = array<i64: 200, 2>}]} {
    %c0 = arith.constant 0 : index
    %c0_0 = arith.constant 0 : index
    %0 = vector.load %arg1[%c0, %c0_0] : memref<200x2xf32, #tpu.memory_space<vmem>>, vector<200x2xf32>
    %c0_1 = arith.constant 0 : index
    %c0_2 = arith.constant 0 : index
    %1 = vector.load %arg2[%c0_1, %c0_2] : memref<2x32xf32, #tpu.memory_space<vmem>>, vector<2x32xf32>
    %2 = vector.extract_strided_slice %0 {offsets = [0, 0], sizes = [200, 1], strides = [1, 1]} : vector<200x2xf32> to vector<200x1xf32>
    %3 = vector.extract_strided_slice %1 {offsets = [0, 0], sizes = [1, 32], strides = [1, 1]} : vector<2x32xf32> to vector<1x32xf32>
    %4 = vector.broadcast %2 : vector<200x1xf32> to vector<200x32xf32>
    %5 = vector.broadcast %3 : vector<1x32xf32> to vector<200x32xf32>
    %6 = arith.mulf %4, %5 : vector<200x32xf32>
    %7 = vector.extract_strided_slice %0 {offsets = [0, 1], sizes = [200, 1], strides = [1, 1]} : vector<200x2xf32> to vector<200x1xf32>
    %8 = vector.extract_strided_slice %1 {offsets = [1, 0], sizes = [1, 32], strides = [1, 1]} : vector<2x32xf32> to vector<1x32xf32>
    %9 = vector.broadcast %7 : vector<200x1xf32> to vector<200x32xf32>
    %10 = vector.broadcast %8 : vector<1x32xf32> to vector<200x32xf32>
    %11 = arith.mulf %9, %10 : vector<200x32xf32>
    %12 = arith.addf %6, %11 : vector<200x32xf32>
    %c0_3 = arith.constant 0 : index
    %c0_4 = arith.constant 0 : index
    %13 = vector.load %arg3[%c0_3, %c0_4] : memref<1x32xf32, #tpu.memory_space<vmem>>, vector<1x32xf32>
    %14 = vector.broadcast %13 : vector<1x32xf32> to vector<200x32xf32>
    %15 = arith.addf %12, %14 : vector<200x32xf32>
    %cst = arith.constant 0.000000e+00 : f32
    %16 = vector.broadcast %cst : f32 to vector<200x32xf32>
    %17 = arith.maximumf %15, %16 : vector<200x32xf32>
    %c0_5 = arith.constant 0 : index
    %c0_6 = arith.constant 0 : index
    %18 = vector.load %arg4[%c0_5, %c0_6] : memref<32x2xf32, #tpu.memory_space<vmem>>, vector<32x2xf32>
    %cst_7 = arith.constant dense<0.000000e+00> : vector<200x2xf32>
    %19 = tpu.matmul %17, %18, %cst_7 {dimension_numbers = #tpu.dot_dimension_numbers<[1], [0], [0], [1], [0, 0, 1, 1], [], []>} : vector<200x32xf32>, vector<32x2xf32>, vector<200x2xf32> -> vector<200x2xf32>
    %c0_8 = arith.constant 0 : index
    %c0_9 = arith.constant 0 : index
    %20 = vector.load %arg5[%c0_8, %c0_9] : memref<1x2xf32, #tpu.memory_space<vmem>>, vector<1x2xf32>
    %21 = vector.broadcast %20 : vector<1x2xf32> to vector<200x2xf32>
    %22 = arith.addf %19, %21 : vector<200x2xf32>
    %c0_10 = arith.constant 0 : index
    %c0_11 = arith.constant 0 : index
    %23 = vector.load %arg6[%c0_10, %c0_11] : memref<200x2xf32, #tpu.memory_space<vmem>>, vector<200x2xf32>
    tpu.vector_store %arg6[%c0_10, %c0_11], %22 {strides = array<i32>} : memref<200x2xf32, #tpu.memory_space<vmem>>, vector<200x2xf32>,
    return
  }
  func.func @transform_0(%arg0: i32) -> (i32, i32) {
    %c0_i32 = arith.constant 0 : i32
    %c0_i32_0 = arith.constant 0 : i32
    return %arg0, %c0_i32 : i32, i32
  }
  func.func @transform_1(%arg0: i32) -> (i32, i32) {
    %c0_i32 = arith.constant 0 : i32
    %c0_i32_0 = arith.constant 0 : i32
    %c0_i32_1 = arith.constant 0 : i32
    return %c0_i32, %c0_i32_0 : i32, i32
  }
  func.func @transform_2(%arg0: i32) -> (i32, i32) {
    %c0_i32 = arith.constant 0 : i32
    %c0_i32_0 = arith.constant 0 : i32
    %c0_i32_1 = arith.constant 0 : i32
    return %c0_i32, %c0_i32_0 : i32, i32
  }
  func.func @transform_3(%arg0: i32) -> (i32, i32) {
    %c0_i32 = arith.constant 0 : i32
    %c0_i32_0 = arith.constant 0 : i32
    %c0_i32_1 = arith.constant 0 : i32
    return %c0_i32, %c0_i32_0 : i32, i32
  }
  func.func @transform_4(%arg0: i32) -> (i32, i32) {
    %c0_i32 = arith.constant 0 : i32
    %c0_i32_0 = arith.constant 0 : i32
    %c0_i32_1 = arith.constant 0 : i32
    return %c0_i32, %c0_i32_0 : i32, i32
  }
  func.func @transform_5(%arg0: i32) -> (i32, i32) {
    %c0_i32 = arith.constant 0 : i32
    %c0_i32_0 = arith.constant 0 : i32
    return %arg0, %c0_i32 : i32, i32
  }
}

</mosaic_0001>

<llo_original>
// kernel: tpu_custom_call.1
$region0: #{tpu_custom_call.1}
  #allocation0 [shape = 'u32[]', space=smem, size = 0x4, offset = 0x4, fixed_abs, tag = 'smem constant byte address 0x4 - core index']
  #allocation1 [shape = 'u32[72,128]{1,0:T(1,128)}', space=vmem, size = 0x9000, scoped, tag = 'internal scratch']
  %s0 = inlined_call_operand.vmem [shape: f32[200,2], index: 0, kind: input, shape index: {}]
  %s1 = inlined_call_operand.vmem [shape: f32[2,32], index: 1, kind: input, shape index: {}]
  %s2 = inlined_call_operand.vmem [shape: f32[1,32], index: 2, kind: input, shape index: {}]
  %s3 = inlined_call_operand.vmem [shape: f32[32,2], index: 3, kind: input, shape index: {}]
  %s4 = inlined_call_operand.vmem [shape: f32[1,2], index: 4, kind: input, shape index: {}]
  %s5 = inlined_call_operand.vmem [shape: f32[200,2], index: 5, kind: output, shape index: {}]
  %s6 = sld [smem:[#allocation0]]
  $region30: #{tpu_custom_call.1} parent=0
    _
  %s8 = ssub.s32 1, %s6
  %s9 = scalar_select 0, %s8, %s6
  // Predicated region
  $region2: #{tpu_custom_call.1} parent=0 // pred_check
    _
  $region3: #{tpu_custom_call.1} parent=0 // pred_check_branch
    %11 = sbr.rel (0) target = $region5
  $region4: #{tpu_custom_call.1} parent=0 // pred_region
    _
  $region5: #{tpu_custom_call.1} parent=0 // pred_fallthru
    _
  // Predicated region
  $region6: #{tpu_custom_call.1} parent=0 // pred_check
    _
  $region7: #{tpu_custom_call.1} parent=0 // pred_check_branch
    %13 = sbr.rel (0) target = $region9
  $region8: #{tpu_custom_call.1} parent=0 // pred_region
    _
  $region9: #{tpu_custom_call.1} parent=0 // pred_fallthru
    _
  // Predicated region
  $region10: #{tpu_custom_call.1} parent=0 // pred_check
    _
  $region11: #{tpu_custom_call.1} parent=0 // pred_check_branch
    %15 = sbr.rel (0) target = $region13
  $region12: #{tpu_custom_call.1} parent=0 // pred_region
    _
  $region13: #{tpu_custom_call.1} parent=0 // pred_fallthru
    _
  // Predicated region
  $region14: #{tpu_custom_call.1} parent=0 // pred_check
    _
  $region15: #{tpu_custom_call.1} parent=0 // pred_check_branch
    %17 = sbr.rel (0) target = $region17
  $region16: #{tpu_custom_call.1} parent=0 // pred_region
    _
  $region17: #{tpu_custom_call.1} parent=0 // pred_fallthru
    _
  // Predicated region
  $region18: #{tpu_custom_call.1} parent=0 // pred_check
    _
  $region19: #{tpu_custom_call.1} parent=0 // pred_check_branch
    %19 = sbr.rel (0) target = $region21
  $region20: #{tpu_custom_call.1} parent=0 // pred_region
    _
  $region21: #{tpu_custom_call.1} parent=0 // pred_fallthru
    _
  %v20 = vld [vmem:[%s0] sm:$0xff]
  %v21 = vld [vmem:[%s0 + $0x8] sm:$0xff]
  %v22 = vld [vmem:[%s0 + $0x10] sm:$0xff]
  %v23 = vld [vmem:[%s0 + $0x18] sm:$0xff]
  %v24 = vld [vmem:[%s0 + $0x20] sm:$0xff]
  %v25 = vld [vmem:[%s0 + $0x28] sm:$0xff]
  %v26 = vld [vmem:[%s0 + $0x30] sm:$0xff]
  %v27 = vld [vmem:[%s0 + $0x38] sm:$0xff]
  %v28 = vld [vmem:[%s0 + $0x40] sm:$0xff]
  %v29 = vld [vmem:[%s0 + $0x48] sm:$0xff]
  %v30 = vld [vmem:[%s0 + $0x50] sm:$0xff]
  %v31 = vld [vmem:[%s0 + $0x58] sm:$0xff]
  %v32 = vld [vmem:[%s0 + $0x60] sm:$0xff]
  %v33 = vld [vmem:[%s0 + $0x68] sm:$0xff]
  %v34 = vld [vmem:[%s0 + $0x70] sm:$0xff]
  %v35 = vld [vmem:[%s0 + $0x78] sm:$0xff]
  %v36 = vld [vmem:[%s0 + $0x80] sm:$0xff]
  %v37 = vld [vmem:[%s0 + $0x88] sm:$0xff]
  %v38 = vld [vmem:[%s0 + $0x90] sm:$0xff]
  %v39 = vld [vmem:[%s0 + $0x98] sm:$0xff]
  %v40 = vld [vmem:[%s0 + $0xa0] sm:$0xff]
  %v41 = vld [vmem:[%s0 + $0xa8] sm:$0xff]
  %v42 = vld [vmem:[%s0 + $0xb0] sm:$0xff]
  %v43 = vld [vmem:[%s0 + $0xb8] sm:$0xff]
  %v44 = vld [vmem:[%s0 + $0xc0] sm:$0xff]
  %v45 = vld [vmem:[%s1] sm:$0x3]
  %47 = vset.pattern.permute.xlu0 0
  %48 = vperm.xlu0 %47, %v20
  %v49 = vpop.permute.xlu0 %48
  %52 = vset.pattern.permute.xlu0 0
  %53 = vperm.xlu0 %52, %v21
  %v54 = vpop.permute.xlu0 %53
  %57 = vset.pattern.permute.xlu0 0
  %58 = vperm.xlu0 %57, %v22
  %v59 = vpop.permute.xlu0 %58
  %62 = vset.pattern.permute.xlu0 0
  %63 = vperm.xlu0 %62, %v23
  %v64 = vpop.permute.xlu0 %63
  %67 = vset.pattern.permute.xlu0 0
  %68 = vperm.xlu0 %67, %v24
  %v69 = vpop.permute.xlu0 %68
  %72 = vset.pattern.permute.xlu0 0
  %73 = vperm.xlu0 %72, %v25
  %v74 = vpop.permute.xlu0 %73
  %77 = vset.pattern.permute.xlu0 0
  %78 = vperm.xlu0 %77, %v26
  %v79 = vpop.permute.xlu0 %78
  %82 = vset.pattern.permute.xlu0 0
  %83 = vperm.xlu0 %82, %v27
  %v84 = vpop.permute.xlu0 %83
  %87 = vset.pattern.permute.xlu0 0
  %88 = vperm.xlu0 %87, %v28
  %v89 = vpop.permute.xlu0 %88
  %92 = vset.pattern.permute.xlu0 0
  %93 = vperm.xlu0 %92, %v29
  %v94 = vpop.permute.xlu0 %93
  %97 = vset.pattern.permute.xlu0 0
  %98 = vperm.xlu0 %97, %v30
  %v99 = vpop.permute.xlu0 %98
  %102 = vset.pattern.permute.xlu0 0
  %103 = vperm.xlu0 %102, %v31
  %v104 = vpop.permute.xlu0 %103
  %107 = vset.pattern.permute.xlu0 0
  %108 = vperm.xlu0 %107, %v32
  %v109 = vpop.permute.xlu0 %108
  %112 = vset.pattern.permute.xlu0 0
  %113 = vperm.xlu0 %112, %v33
  %v114 = vpop.permute.xlu0 %113
  %117 = vset.pattern.permute.xlu0 0
  %118 = vperm.xlu0 %117, %v34
  %v119 = vpop.permute.xlu0 %118
  %122 = vset.pattern.permute.xlu0 0
  %123 = vperm.xlu0 %122, %v35
  %v124 = vpop.permute.xlu0 %123
  %127 = vset.pattern.permute.xlu0 0
  %128 = vperm.xlu0 %127, %v36
  %v129 = vpop.permute.xlu0 %128
  %132 = vset.pattern.permute.xlu0 0
  %133 = vperm.xlu0 %132, %v37
  %v134 = vpop.permute.xlu0 %133
  %137 = vset.pattern.permute.xlu0 0
  %138 = vperm.xlu0 %137, %v38
  %v139 = vpop.permute.xlu0 %138
  %142 = vset.pattern.permute.xlu0 0
  %143 = vperm.xlu0 %142, %v39
  %v144 = vpop.permute.xlu0 %143
  %147 = vset.pattern.permute.xlu0 0
  %148 = vperm.xlu0 %147, %v40
  %v149 = vpop.permute.xlu0 %148
  %152 = vset.pattern.permute.xlu0 0
  %153 = vperm.xlu0 %152, %v41
  %v154 = vpop.permute.xlu0 %153
  %157 = vset.pattern.permute.xlu0 0
  %158 = vperm.xlu0 %157, %v42
  %v159 = vpop.permute.xlu0 %158
  %162 = vset.pattern.permute.xlu0 0
  %163 = vperm.xlu0 %162, %v43
  %v164 = vpop.permute.xlu0 %163
  %167 = vset.pattern.permute.xlu0 0
  %168 = vperm.xlu0 %167, %v44
  %v169 = vpop.permute.xlu0 %168
  %v171 = vperm.slane %v45, 0
  %v172 = vmul.f32 %v49, %v171
  %v173 = vmul.f32 %v54, %v171
  %v174 = vmul.f32 %v59, %v171
  %v175 = vmul.f32 %v64, %v171
  %v176 = vmul.f32 %v69, %v171
  %v177 = vmul.f32 %v74, %v171
  %v178 = vmul.f32 %v79, %v171
  %v179 = vmul.f32 %v84, %v171
  %v180 = vmul.f32 %v89, %v171
  %v181 = vmul.f32 %v94, %v171
  %v182 = vmul.f32 %v99, %v171
  %v183 = vmul.f32 %v104, %v171
  %v184 = vmul.f32 %v109, %v171
  %v185 = vmul.f32 %v114, %v171
  %v186 = vmul.f32 %v119, %v171
  %v187 = vmul.f32 %v124, %v171
  %v188 = vmul.f32 %v129, %v171
  %v189 = vmul.f32 %v134, %v171
  %v190 = vmul.f32 %v139, %v171
  %v191 = vmul.f32 %v144, %v171
  %v192 = vmul.f32 %v149, %v171
  %v193 = vmul.f32 %v154, %v171
  %v194 = vmul.f32 %v159, %v171
  %v195 = vmul.f32 %v164, %v171
  %v196 = vmul.f32 %v169, %v171
  %197 = vset.pattern.permute.xlu0 1
  %198 = vperm.xlu0 %197, %v20
  %v199 = vpop.permute.xlu0 %198
  %201 = vset.pattern.permute.xlu0 1
  %202 = vperm.xlu0 %201, %v21
  %v203 = vpop.permute.xlu0 %202
  %205 = vset.pattern.permute.xlu0 1
  %206 = vperm.xlu0 %205, %v22
  %v207 = vpop.permute.xlu0 %206
  %209 = vset.pattern.permute.xlu0 1
  %210 = vperm.xlu0 %209, %v23
  %v211 = vpop.permute.xlu0 %210
  %213 = vset.pattern.permute.xlu0 1
  %214 = vperm.xlu0 %213, %v24
  %v215 = vpop.permute.xlu0 %214
  %217 = vset.pattern.permute.xlu0 1
  %218 = vperm.xlu0 %217, %v25
  %v219 = vpop.permute.xlu0 %218
  %221 = vset.pattern.permute.xlu0 1
  %222 = vperm.xlu0 %221, %v26
  %v223 = vpop.permute.xlu0 %222
  %225 = vset.pattern.permute.xlu0 1
  %226 = vperm.xlu0 %225, %v27
  %v227 = vpop.permute.xlu0 %226
  %229 = vset.pattern.permute.xlu0 1
  %230 = vperm.xlu0 %229, %v28
  %v231 = vpop.permute.xlu0 %230
  %233 = vset.pattern.permute.xlu0 1
  %234 = vperm.xlu0 %233, %v29
  %v235 = vpop.permute.xlu0 %234
  %237 = vset.pattern.permute.xlu0 1
  %238 = vperm.xlu0 %237, %v30
  %v239 = vpop.permute.xlu0 %238
  %241 = vset.pattern.permute.xlu0 1
  %242 = vperm.xlu0 %241, %v31
  %v243 = vpop.permute.xlu0 %242
  %245 = vset.pattern.permute.xlu0 1
  %246 = vperm.xlu0 %245, %v32
  %v247 = vpop.permute.xlu0 %246
  %249 = vset.pattern.permute.xlu0 1
  %250 = vperm.xlu0 %249, %v33
  %v251 = vpop.permute.xlu0 %250
  %253 = vset.pattern.permute.xlu0 1
  %254 = vperm.xlu0 %253, %v34
  %v255 = vpop.permute.xlu0 %254
  %257 = vset.pattern.permute.xlu0 1
  %258 = vperm.xlu0 %257, %v35
  %v259 = vpop.permute.xlu0 %258
  %261 = vset.pattern.permute.xlu0 1
  %262 = vperm.xlu0 %261, %v36
  %v263 = vpop.permute.xlu0 %262
  %265 = vset.pattern.permute.xlu0 1
  %266 = vperm.xlu0 %265, %v37
  %v267 = vpop.permute.xlu0 %266
  %269 = vset.pattern.permute.xlu0 1
  %270 = vperm.xlu0 %269, %v38
  %v271 = vpop.permute.xlu0 %270
  %273 = vset.pattern.permute.xlu0 1
  %274 = vperm.xlu0 %273, %v39
  %v275 = vpop.permute.xlu0 %274
  %277 = vset.pattern.permute.xlu0 1
  %278 = vperm.xlu0 %277, %v40
  %v279 = vpop.permute.xlu0 %278
  %281 = vset.pattern.permute.xlu0 1
  %282 = vperm.xlu0 %281, %v41
  %v283 = vpop.permute.xlu0 %282
  %285 = vset.pattern.permute.xlu0 1
  %286 = vperm.xlu0 %285, %v42
  %v287 = vpop.permute.xlu0 %286
  %289 = vset.pattern.permute.xlu0 1
  %290 = vperm.xlu0 %289, %v43
  %v291 = vpop.permute.xlu0 %290
  %293 = vset.pattern.permute.xlu0 1
  %294 = vperm.xlu0 %293, %v44
  %v295 = vpop.permute.xlu0 %294
  %v297 = vperm.slane %v45, 1
  %v298 = vmul.f32 %v199, %v297
  %v299 = vmul.f32 %v203, %v297
  %v300 = vmul.f32 %v207, %v297
  %v301 = vmul.f32 %v211, %v297
  %v302 = vmul.f32 %v215, %v297
  %v303 = vmul.f32 %v219, %v297
  %v304 = vmul.f32 %v223, %v297
  %v305 = vmul.f32 %v227, %v297
  %v306 = vmul.f32 %v231, %v297
  %v307 = vmul.f32 %v235, %v297
  %v308 = vmul.f32 %v239, %v297
  %v309 = vmul.f32 %v243, %v297
  %v310 = vmul.f32 %v247, %v297
  %v311 = vmul.f32 %v251, %v297
  %v312 = vmul.f32 %v255, %v297
  %v313 = vmul.f32 %v259, %v297
  %v314 = vmul.f32 %v263, %v297
  %v315 = vmul.f32 %v267, %v297
  %v316 = vmul.f32 %v271, %v297
  %v317 = vmul.f32 %v275, %v297
  %v318 = vmul.f32 %v279, %v297
  %v319 = vmul.f32 %v283, %v297
  %v320 = vmul.f32 %v287, %v297
  %v321 = vmul.f32 %v291, %v297
  %v322 = vmul.f32 %v295, %v297
  %v323 = vadd.f32 %v172, %v298
  %v324 = vadd.f32 %v173, %v299
  %v325 = vadd.f32 %v174, %v300
  %v326 = vadd.f32 %v175, %v301
  %v327 = vadd.f32 %v176, %v302
  %v328 = vadd.f32 %v177, %v303
  %v329 = vadd.f32 %v178, %v304
  %v330 = vadd.f32 %v179, %v305
  %v331 = vadd.f32 %v180, %v306
  %v332 = vadd.f32 %v181, %v307
  %v333 = vadd.f32 %v182, %v308
  %v334 = vadd.f32 %v183, %v309
  %v335 = vadd.f32 %v184, %v310
  %v336 = vadd.f32 %v185, %v311
  %v337 = vadd.f32 %v186, %v312
  %v338 = vadd.f32 %v187, %v313
  %v339 = vadd.f32 %v188, %v314
  %v340 = vadd.f32 %v189, %v315
  %v341 = vadd.f32 %v190, %v316
  %v342 = vadd.f32 %v191, %v317
  %v343 = vadd.f32 %v192, %v318
  %v344 = vadd.f32 %v193, %v319
  %v345 = vadd.f32 %v194, %v320
  %v346 = vadd.f32 %v195, %v321
  %v347 = vadd.f32 %v196, %v322
  %v348 = vld [vmem:[%s2] sm:$0x1]
  %v350 = vperm.slane %v348, 0
  %v352 = vadd.f32 %v323, %v350
  %v353 = vadd.f32 %v324, %v350
  %v354 = vadd.f32 %v325, %v350
  %v355 = vadd.f32 %v326, %v350
  %v356 = vadd.f32 %v327, %v350
  %v357 = vadd.f32 %v328, %v350
  %v358 = vadd.f32 %v329, %v350
  %v359 = vadd.f32 %v330, %v350
  %v360 = vadd.f32 %v331, %v350
  %v361 = vadd.f32 %v332, %v350
  %v362 = vadd.f32 %v333, %v350
  %v363 = vadd.f32 %v334, %v350
  %v364 = vadd.f32 %v335, %v350
  %v365 = vadd.f32 %v336, %v350
  %v366 = vadd.f32 %v337, %v350
  %v367 = vadd.f32 %v338, %v350
  %v368 = vadd.f32 %v339, %v350
  %v369 = vadd.f32 %v340, %v350
  %v370 = vadd.f32 %v341, %v350
  %v371 = vadd.f32 %v342, %v350
  %v372 = vadd.f32 %v343, %v350
  %v373 = vadd.f32 %v344, %v350
  %v374 = vadd.f32 %v345, %v350
  %v375 = vadd.f32 %v346, %v350
  %v376 = vadd.f32 %v347, %v350
  %v377 = vmax.f32 %v352, 0.0
  %v378 = vmax.f32 %v353, 0.0
  %v379 = vmax.f32 %v354, 0.0
  %v380 = vmax.f32 %v355, 0.0
  %v381 = vmax.f32 %v356, 0.0
  %v382 = vmax.f32 %v357, 0.0
  %v383 = vmax.f32 %v358, 0.0
  %v384 = vmax.f32 %v359, 0.0
  %v385 = vmax.f32 %v360, 0.0
  %v386 = vmax.f32 %v361, 0.0
  %v387 = vmax.f32 %v362, 0.0
  %v388 = vmax.f32 %v363, 0.0
  %v389 = vmax.f32 %v364, 0.0
  %v390 = vmax.f32 %v365, 0.0
  %v391 = vmax.f32 %v366, 0.0
  %v392 = vmax.f32 %v367, 0.0
  %v393 = vmax.f32 %v368, 0.0
  %v394 = vmax.f32 %v369, 0.0
  %v395 = vmax.f32 %v370, 0.0
  %v396 = vmax.f32 %v371, 0.0
  %v397 = vmax.f32 %v372, 0.0
  %v398 = vmax.f32 %v373, 0.0
  %v399 = vmax.f32 %v374, 0.0
  %v400 = vmax.f32 %v375, 0.0
  %v401 = vmax.f32 %v376, 0.0
  %v402 = vld [vmem:[%s3] sm:$0xff]
  %v403 = vld [vmem:[%s3 + $0x8] sm:$0xff]
  %v404 = vld [vmem:[%s3 + $0x10] sm:$0xff]
  %v405 = vld [vmem:[%s3 + $0x18] sm:$0xff]
  %v406 = vld [vmem:[%s4] sm:$0x1]
  %v408 = vperm.slane %v406, 0
  %vm410 = vcmask 261120
  %v412 = vsel %vm410, %v377, 0
  %v415 = vsel %vm410, %v378, 0
  %v418 = vsel %vm410, %v379, 0
  %v421 = vsel %vm410, %v380, 0
  %v424 = vsel %vm410, %v381, 0
  %v427 = vsel %vm410, %v382, 0
  %v430 = vsel %vm410, %v383, 0
  %v433 = vsel %vm410, %v384, 0
  %v436 = vsel %vm410, %v385, 0
  %v439 = vsel %vm410, %v386, 0
  %v442 = vsel %vm410, %v387, 0
  %v445 = vsel %vm410, %v388, 0
  %v448 = vsel %vm410, %v389, 0
  %v451 = vsel %vm410, %v390, 0
  %v454 = vsel %vm410, %v391, 0
  %v457 = vsel %vm410, %v392, 0
  %v460 = vsel %vm410, %v393, 0
  %v463 = vsel %vm410, %v394, 0
  %v466 = vsel %vm410, %v395, 0
  %v469 = vsel %vm410, %v396, 0
  %v472 = vsel %vm410, %v397, 0
  %v475 = vsel %vm410, %v398, 0
  %v478 = vsel %vm410, %v399, 0
  %v481 = vsel %vm410, %v400, 0
  %v484 = vsel %vm410, %v401, 0
  %486 = vmatpush.msra.mxu0 0.0
  %487 = vmatpush.msra.mxu0 0.0
  %488 = vmatpush.msra.mxu0 0.0
  %489 = vmatpush.msra.mxu0 0.0
  %490 = vmatpush.msra.mxu0 0.0
  %491 = vmatpush.msra.mxu0 0.0
  %492 = vmatpush.msra.mxu0 0.0
  %493 = vmatpush.msra.mxu0 0.0
  %494 = vmatpush.msra.mxu0 0.0
  %495 = vmatpush.msra.mxu0 0.0
  %496 = vmatpush.msra.mxu0 0.0
  %497 = vmatpush.msra.mxu0 0.0
  %498 = vmatpush.msra.mxu0 %v405
  %499 = vmatpush.msra.mxu0 %v404
  %500 = vmatpush.msra.mxu0 %v403
  %501 = vmatpush.msra.mxu0 %v402
  %502 = vmatmul.f32.gmra.mxu0 %v412
  %v503 = vpop.f32.mrf.mxu0
  %v504 = vadd.f32 %v408, %v503
  %505 = vmatmul.f32.gmra.mxu0 %v415
  %v506 = vpop.f32.mrf.mxu0
  %v507 = vadd.f32 %v408, %v506
  %508 = vmatmul.f32.gmra.mxu0 %v418
  %v509 = vpop.f32.mrf.mxu0
  %v510 = vadd.f32 %v408, %v509
  %511 = vmatmul.f32.gmra.mxu0 %v421
  %v512 = vpop.f32.mrf.mxu0
  %v513 = vadd.f32 %v408, %v512
  %514 = vmatmul.f32.gmra.mxu0 %v424
  %v515 = vpop.f32.mrf.mxu0
  %v516 = vadd.f32 %v408, %v515
  %517 = vmatmul.f32.gmra.mxu0 %v427
  %v518 = vpop.f32.mrf.mxu0
  %v519 = vadd.f32 %v408, %v518
  %520 = vmatmul.f32.gmra.mxu0 %v430
  %v521 = vpop.f32.mrf.mxu0
  %v522 = vadd.f32 %v408, %v521
  %523 = vmatmul.f32.gmra.mxu0 %v433
  %v524 = vpop.f32.mrf.mxu0
  %v525 = vadd.f32 %v408, %v524
  %526 = vmatmul.f32.gmra.mxu0 %v436
  %v527 = vpop.f32.mrf.mxu0
  %v528 = vadd.f32 %v408, %v527
  %529 = vmatmul.f32.gmra.mxu0 %v439
  %v530 = vpop.f32.mrf.mxu0
  %v531 = vadd.f32 %v408, %v530
  %532 = vmatmul.f32.gmra.mxu0 %v442
  %v533 = vpop.f32.mrf.mxu0
  %v534 = vadd.f32 %v408, %v533
  %535 = vmatmul.f32.gmra.mxu0 %v445
  %v536 = vpop.f32.mrf.mxu0
  %v537 = vadd.f32 %v408, %v536
  %538 = vmatmul.f32.gmra.mxu0 %v448
  %v539 = vpop.f32.mrf.mxu0
  %v540 = vadd.f32 %v408, %v539
  %541 = vmatmul.f32.gmra.mxu0 %v451
  %v542 = vpop.f32.mrf.mxu0
  %v543 = vadd.f32 %v408, %v542
  %544 = vmatmul.f32.gmra.mxu0 %v454
  %v545 = vpop.f32.mrf.mxu0
  %v546 = vadd.f32 %v408, %v545
  %547 = vmatmul.f32.gmra.mxu0 %v457
  %v548 = vpop.f32.mrf.mxu0
  %v549 = vadd.f32 %v408, %v548
  %550 = vmatmul.f32.gmra.mxu0 %v460
  %v551 = vpop.f32.mrf.mxu0
  %v552 = vadd.f32 %v408, %v551
  %553 = vmatmul.f32.gmra.mxu0 %v463
  %v554 = vpop.f32.mrf.mxu0
  %v555 = vadd.f32 %v408, %v554
  %556 = vmatmul.f32.gmra.mxu0 %v466
  %v557 = vpop.f32.mrf.mxu0
  %v558 = vadd.f32 %v408, %v557
  %559 = vmatmul.f32.gmra.mxu0 %v469
  %v560 = vpop.f32.mrf.mxu0
  %v561 = vadd.f32 %v408, %v560
  %562 = vmatmul.f32.gmra.mxu0 %v472
  %v563 = vpop.f32.mrf.mxu0
  %v564 = vadd.f32 %v408, %v563
  %565 = vmatmul.f32.gmra.mxu0 %v475
  %v566 = vpop.f32.mrf.mxu0
  %v567 = vadd.f32 %v408, %v566
  %568 = vmatmul.f32.gmra.mxu0 %v478
  %v569 = vpop.f32.mrf.mxu0
  %v570 = vadd.f32 %v408, %v569
  %571 = vmatmul.f32.gmra.mxu0 %v481
  %v572 = vpop.f32.mrf.mxu0
  %v573 = vadd.f32 %v408, %v572
  %574 = vmatmul.f32.gmra.mxu0 %v484
  %v575 = vpop.f32.mrf.mxu0
  %v576 = vadd.f32 %v408, %v575
  %577 = vdwg.mxu0
  %vm578 = vcmask 15360
  %579 = vst.msk [vmem:[%s5] sm:$0xff] %vm578, %v504
  %580 = vst.msk [vmem:[%s5 + $0x8] sm:$0xff] %vm578, %v507
  %581 = vst.msk [vmem:[%s5 + $0x10] sm:$0xff] %vm578, %v510
  %582 = vst.msk [vmem:[%s5 + $0x18] sm:$0xff] %vm578, %v513
  %583 = vst.msk [vmem:[%s5 + $0x20] sm:$0xff] %vm578, %v516
  %584 = vst.msk [vmem:[%s5 + $0x28] sm:$0xff] %vm578, %v519
  %585 = vst.msk [vmem:[%s5 + $0x30] sm:$0xff] %vm578, %v522
  %586 = vst.msk [vmem:[%s5 + $0x38] sm:$0xff] %vm578, %v525
  %587 = vst.msk [vmem:[%s5 + $0x40] sm:$0xff] %vm578, %v528
  %588 = vst.msk [vmem:[%s5 + $0x48] sm:$0xff] %vm578, %v531
  %589 = vst.msk [vmem:[%s5 + $0x50] sm:$0xff] %vm578, %v534
  %590 = vst.msk [vmem:[%s5 + $0x58] sm:$0xff] %vm578, %v537
  %591 = vst.msk [vmem:[%s5 + $0x60] sm:$0xff] %vm578, %v540
  %592 = vst.msk [vmem:[%s5 + $0x68] sm:$0xff] %vm578, %v543
  %593 = vst.msk [vmem:[%s5 + $0x70] sm:$0xff] %vm578, %v546
  %594 = vst.msk [vmem:[%s5 + $0x78] sm:$0xff] %vm578, %v549
  %595 = vst.msk [vmem:[%s5 + $0x80] sm:$0xff] %vm578, %v552
  %596 = vst.msk [vmem:[%s5 + $0x88] sm:$0xff] %vm578, %v555
  %597 = vst.msk [vmem:[%s5 + $0x90] sm:$0xff] %vm578, %v558
  %598 = vst.msk [vmem:[%s5 + $0x98] sm:$0xff] %vm578, %v561
  %599 = vst.msk [vmem:[%s5 + $0xa0] sm:$0xff] %vm578, %v564
  %600 = vst.msk [vmem:[%s5 + $0xa8] sm:$0xff] %vm578, %v567
  %601 = vst.msk [vmem:[%s5 + $0xb0] sm:$0xff] %vm578, %v570
  %602 = vst.msk [vmem:[%s5 + $0xb8] sm:$0xff] %vm578, %v573
  %603 = vst.msk [vmem:[%s5 + $0xc0] sm:$0xff] %vm578, %v576
  // Predicated region
  $region22: #{tpu_custom_call.1} parent=0 // pred_check
    _
  $region23: #{tpu_custom_call.1} parent=0 // pred_check_branch
    %605 = sbr.rel (0) target = $region25
  $region24: #{tpu_custom_call.1} parent=0 // pred_region
    _
  $region25: #{tpu_custom_call.1} parent=0 // pred_fallthru
    _
  // Predicated region
  $region26: #{tpu_custom_call.1} parent=0 // pred_check
    _
  $region27: #{tpu_custom_call.1} parent=0 // pred_check_branch
    %607 = sbr.rel (0) target = $region29
  $region28: #{tpu_custom_call.1} parent=0 // pred_region
    _
  $region29: #{tpu_custom_call.1} parent=0 // pred_fallthru
    _

</llo_original>
